<compile_context>
chip_gen: v6e
topology: v6e:2x2x1
jax: 0.10.0
libtpu: 0.0.40
codegen_flags: <defaults>
</compile_context>

<pallas_src>
import jax
import jax.numpy as jnp
from jax.experimental import pallas as pl
from jax.experimental.pallas import tpu as pltpu


def _ff_kernel(x_ref, w1_ref, b1_ref, w2_ref, b2_ref, o_ref, acc_ref):
    # x_ref: (tm, D)   w1_ref: (D, th)   b1_ref: (1, th)
    # w2_ref: (th, D)  b2_ref: (1, D)    o_ref: (tm, D)  acc_ref: (tm, D) f32
    k = pl.program_id(1)

    @pl.when(k == 0)
    def _():
        acc_ref[...] = jnp.zeros_like(acc_ref)

    # First matmul chunk: (tm, D) @ (D, th) -> (tm, th), f32 on the MXU.
    h = jnp.dot(x_ref[...], w1_ref[...], preferred_element_type=jnp.float32)
    # Bias + ReLU while the chunk is in vregs (VPU filler under the MXU).
    h = jnp.maximum(h + b1_ref[...], 0.0)
    # Second matmul chunk: (tm, th) @ (th, D) -> (tm, D), accumulate in f32.
    acc_ref[...] += jnp.dot(h.astype(w2_ref.dtype), w2_ref[...],
                            preferred_element_type=jnp.float32)

    @pl.when(k == pl.num_programs(1) - 1)
    def _():
        # Final bias, downcast, write-out.  Dropout == identity (eval mode).
        o_ref[...] = (acc_ref[...] + b2_ref[...]).astype(o_ref.dtype)


def _round_up(a, b):
    return -(-a // b) * b


def _vmem_working_set(tm, D, th, isz):
    """Bytes of VMEM a (tm, th) configuration needs (double-buffered tiles)."""
    x_tiles = 2 * tm * D * isz                 # x input tiles
    out_tiles = 2 * tm * D * isz               # output tiles
    w_tiles = 2 * 2 * D * th * isz             # W1 + W2 chunks, double-buffered
    biases = 2 * (th + D) * isz                # b1 chunk + b2
    acc = tm * D * 4                           # f32 accumulator scratch
    hidden = tm * th * (4 + isz)               # f32 first-matmul result + cast
    return x_tiles + out_tiles + w_tiles + biases + acc + hidden


def _hw_params():
    """(tm_target, physical VMEM bytes) for the current TPU generation."""
    kind = ""
    try:
        kind = jax.devices()[0].device_kind.lower()
    except Exception:
        pass
    try:
        vmem_cap = int(pltpu.get_tpu_info().vmem_capacity_bytes)
    except Exception:
        vmem_cap = (64 << 20) if "v7" in kind else (128 << 20)
    if "v6" in kind:
        tm_target = 1024      # v6e ridge ~650 FLOP/byte -> big row tiles
    elif "v7" in kind:
        tm_target = 512       # compute-bound already; must fit 64 MiB VMEM
    else:
        tm_target = 512       # v5e and unknown
    return tm_target, vmem_cap


def _select_tiles(M, D, H_pad, isz, tm_target, th_target, vmem_budget):
    """Pick (tm, th) that fit the VMEM budget, preferring resident weights."""
    row_align = 8 * max(1, 4 // isz)           # f32: 8, bf16: 16, int8/fp8: 32
    tm = min(tm_target, _round_up(M, row_align))
    tm = max(row_align, _round_up(tm, row_align))
    while True:
        # Weights-resident fast path: one k step, W1/W2 DMA'd exactly once.
        if _vmem_working_set(tm, D, H_pad, isz) <= vmem_budget:
            return tm, H_pad
        th = max(128, (min(th_target, H_pad) // 128) * 128)
        while th > 128 and (H_pad % th != 0 or
                            _vmem_working_set(tm, D, th, isz) > vmem_budget):
            th -= 128
        if H_pad % th == 0 and _vmem_working_set(tm, D, th, isz) <= vmem_budget:
            return tm, th
        if tm <= row_align:
            return tm, 128                     # smallest legal tiles
        tm = max(row_align, _round_up(tm // 2, row_align))


def ff_layer(x, w1, b1, w2, b2, *, tm=None, th=512):
    """x: (B, S, D); w1: (D, 4D); b1: (4D,); w2: (4D, D); b2: (D,)."""
    B, S, D = x.shape
    H = w1.shape[1]
    assert w1.shape == (D, H) and w2.shape == (H, D)
    M = B * S
    isz = jnp.dtype(x.dtype).itemsize

    tm_target, vmem_cap = _hw_params()
    if tm is not None:
        tm_target = tm
    vmem_budget = int(0.75 * vmem_cap)         # headroom for compiler scratch

    # Pad the hidden dim to a multiple of 128 so every chunk size is legal.
    # Zero-padded W1 columns / b1 entries give ReLU(0) = 0, and the matching
    # zero rows of W2 contribute nothing to the second matmul -> exact.
    H_pad = _round_up(H, 128)
    if H_pad != H:
        w1 = jnp.pad(w1, ((0, 0), (0, H_pad - H)))
        b1 = jnp.pad(b1, ((0, H_pad - H),))
        w2 = jnp.pad(w2, ((0, H_pad - H), (0, 0)))

    tm, th = _select_tiles(M, D, H_pad, isz, tm_target, th, vmem_budget)
    M_pad = _round_up(M, tm)

    x2 = x.reshape(M, D)
    if M_pad != M:
        x2 = jnp.pad(x2, ((0, M_pad - M), (0, 0)))
    b1_2 = b1.reshape(1, H_pad)
    b2_2 = b2.reshape(1, D)

    n_k = H_pad // th
    working_set = _vmem_working_set(tm, D, th, isz)
    vmem_limit = int(min(int(0.90 * vmem_cap),
                         max(32 << 20, 2 * working_set)))

    # Cost estimate: weights are re-read once per row tile unless resident.
    flops = 4 * M_pad * D * H_pad              # two matmuls
    weight_reads = (M_pad // tm) if n_k > 1 else 1
    bytes_accessed = (isz * M_pad * D * 2                   # x in + y out
                      + weight_reads * isz * 2 * D * H_pad  # W1 + W2 streams
                      + isz * (H_pad + D))                  # biases
    cost = pl.CostEstimate(flops=flops, transcendentals=0,
                           bytes_accessed=bytes_accessed)

    out2 = pl.pallas_call(
        _ff_kernel,
        out_shape=jax.ShapeDtypeStruct((M_pad, D), x.dtype),
        grid_spec=pltpu.PrefetchScalarGridSpec(
            num_scalar_prefetch=0,
            grid=(M_pad // tm, n_k),           # reduction axis (H chunks) last
            in_specs=[
                pl.BlockSpec((tm, D), lambda i, k: (i, 0)),   # x rows
                pl.BlockSpec((D, th), lambda i, k: (0, k)),   # W1 chunk
                pl.BlockSpec((1, th), lambda i, k: (0, k)),   # b1 chunk
                pl.BlockSpec((th, D), lambda i, k: (k, 0)),   # W2 chunk
                pl.BlockSpec((1, D), lambda i, k: (0, 0)),    # b2
            ],
            out_specs=pl.BlockSpec((tm, D), lambda i, k: (i, 0)),
            scratch_shapes=[pltpu.VMEM((tm, D), jnp.float32)],
        ),
        compiler_params=pltpu.CompilerParams(
            dimension_semantics=("parallel", "arbitrary"),
            vmem_limit_bytes=vmem_limit),
        cost_estimate=cost,
    )(x2, w1, b1_2, w2, b2_2)

    if M_pad != M:
        out2 = out2[:M]
    return out2.reshape(B, S, D)


def _ref_ff(x, w1, b1, w2, b2):
    h = jnp.maximum(x @ w1 + b1, 0.0)
    return h @ w2 + b2


if __name__ == "__main__":
    B, S, D = 2, 8, 32       # small shapes: batch=2, seq=8, dims=32
    H = 4 * D

    key = jax.random.PRNGKey(0)
    kx, kw1, kb1, kw2, kb2 = jax.random.split(key, 5)

    x = jax.random.normal(kx, (B, S, D), dtype=jnp.float32)
    # Deterministic, PyTorch-like uniform init (bound = 1/sqrt(fan_in)).
    w1 = jax.random.uniform(kw1, (D, H), jnp.float32,
                            minval=-1.0 / D**0.5, maxval=1.0 / D**0.5)
    b1 = jax.random.uniform(kb1, (H,), jnp.float32,
                            minval=-1.0 / D**0.5, maxval=1.0 / D**0.5)
    w2 = jax.random.uniform(kw2, (H, D), jnp.float32,
                            minval=-1.0 / H**0.5, maxval=1.0 / H**0.5)
    b2 = jax.random.uniform(kb2, (D,), jnp.float32,
                            minval=-1.0 / H**0.5, maxval=1.0 / H**0.5)

    y = ff_layer(x, w1, b1, w2, b2)
    y = jax.block_until_ready(y)

    assert y.shape == x.shape, (y.shape, x.shape)

    y_ref = _ref_ff(x, w1, b1, w2, b2)
    assert jnp.allclose(y, y_ref, atol=1e-4, rtol=1e-4), \
        float(jnp.max(jnp.abs(y - y_ref)))

    print("KERNEL_OK")
</pallas_src>

<mosaic_0001>
module attributes {stable_mosaic.version = 11 : i64} {
  func.func @_ff_kernel(%arg0: i32, %arg1: i32, %arg2: memref<16x32xf32, #tpu.memory_space<vmem>>, %arg3: memref<32x128xf32, #tpu.memory_space<vmem>>, %arg4: memref<1x128xf32, #tpu.memory_space<vmem>>, %arg5: memref<128x32xf32, #tpu.memory_space<vmem>>, %arg6: memref<1x32xf32, #tpu.memory_space<vmem>>, %arg7: memref<16x32xf32, #tpu.memory_space<vmem>>, %arg8: memref<16x32xf32, #tpu.memory_space<vmem>>) attributes {dimension_semantics = [#tpu.dimension_semantics<parallel>, #tpu.dimension_semantics<arbitrary>], iteration_bounds = array<i64: 1, 1>, scalar_prefetch = 0 : i64, scratch_operands = 1 : i64, tpu.core_type = #tpu.core_type<tc>, window_params = [{transform_indices = @transform_0, window_bounds = array<i64: 16, 32>}, {transform_indices = @transform_1, window_bounds = array<i64: 32, 128>}, {transform_indices = @transform_2, window_bounds = array<i64: 1, 128>}, {transform_indices = @transform_3, window_bounds = array<i64: 128, 32>}, {pipeline_mode = #tpu.pipeline_mode<synchronous>, transform_indices = @transform_4, window_bounds = array<i64: 1, 32>}, {transform_indices = @transform_5, window_bounds = array<i64: 16, 32>}]} {
    %c0_i32 = arith.constant 0 : i32
    %0 = arith.cmpi eq, %arg1, %c0_i32 : i32
    %1 = arith.extui %0 : i1 to i32
    %c0_i32_0 = arith.constant 0 : i32
    %2 = arith.cmpi ne, %1, %c0_i32_0 : i32
    scf.if %2 {
      %cst_16 = arith.constant 0.000000e+00 : f32
      %19 = vector.broadcast %cst_16 : f32 to vector<16x32xf32>
      %c0_17 = arith.constant 0 : index
      %c0_18 = arith.constant 0 : index
      %20 = vector.load %arg8[%c0_17, %c0_18] : memref<16x32xf32, #tpu.memory_space<vmem>>, vector<16x32xf32>
      tpu.vector_store %arg8[%c0_17, %c0_18], %19 {strides = array<i32>} : memref<16x32xf32, #tpu.memory_space<vmem>>, vector<16x32xf32>,
    } else {
    }
    %c0 = arith.constant 0 : index
    %c0_1 = arith.constant 0 : index
    %3 = vector.load %arg2[%c0, %c0_1] : memref<16x32xf32, #tpu.memory_space<vmem>>, vector<16x32xf32>
    %c0_2 = arith.constant 0 : index
    %c0_3 = arith.constant 0 : index
    %4 = vector.load %arg3[%c0_2, %c0_3] : memref<32x128xf32, #tpu.memory_space<vmem>>, vector<32x128xf32>
    %cst = arith.constant dense<0.000000e+00> : vector<16x128xf32>
    %5 = tpu.matmul %3, %4, %cst {dimension_numbers = #tpu.dot_dimension_numbers<[1], [0], [0], [1], [0, 0, 1, 1], [], []>} : vector<16x32xf32>, vector<32x128xf32>, vector<16x128xf32> -> vector<16x128xf32>
    %c0_4 = arith.constant 0 : index
    %c0_5 = arith.constant 0 : index
    %6 = vector.load %arg4[%c0_4, %c0_5] : memref<1x128xf32, #tpu.memory_space<vmem>>, vector<1x128xf32>
    %7 = vector.broadcast %6 : vector<1x128xf32> to vector<16x128xf32>
    %8 = arith.addf %5, %7 : vector<16x128xf32>
    %cst_6 = arith.constant 0.000000e+00 : f32
    %9 = vector.broadcast %cst_6 : f32 to vector<16x128xf32>
    %10 = arith.maximumf %8, %9 : vector<16x128xf32>
    %c0_7 = arith.constant 0 : index
    %c0_8 = arith.constant 0 : index
    %11 = vector.load %arg8[%c0_7, %c0_8] : memref<16x32xf32, #tpu.memory_space<vmem>>, vector<16x32xf32>
    %c0_9 = arith.constant 0 : index
    %c0_10 = arith.constant 0 : index
    %12 = vector.load %arg5[%c0_9, %c0_10] : memref<128x32xf32, #tpu.memory_space<vmem>>, vector<128x32xf32>
    %cst_11 = arith.constant dense<0.000000e+00> : vector<16x32xf32>
    %13 = tpu.matmul %10, %12, %cst_11 {dimension_numbers = #tpu.dot_dimension_numbers<[1], [0], [0], [1], [0, 0, 1, 1], [], []>} : vector<16x128xf32>, vector<128x32xf32>, vector<16x32xf32> -> vector<16x32xf32>
    %14 = arith.addf %11, %13 : vector<16x32xf32>
    %c0_12 = arith.constant 0 : index
    %c0_13 = arith.constant 0 : index
    %15 = vector.load %arg8[%c0_12, %c0_13] : memref<16x32xf32, #tpu.memory_space<vmem>>, vector<16x32xf32>
    tpu.vector_store %arg8[%c0_12, %c0_13], %14 {strides = array<i32>} : memref<16x32xf32, #tpu.memory_space<vmem>>, vector<16x32xf32>,
    %c0_i32_14 = arith.constant 0 : i32
    %16 = arith.cmpi eq, %arg1, %c0_i32_14 : i32
    %17 = arith.extui %16 : i1 to i32
    %c0_i32_15 = arith.constant 0 : i32
    %18 = arith.cmpi ne, %17, %c0_i32_15 : i32
    scf.if %18 {
      %c0_16 = arith.constant 0 : index
      %c0_17 = arith.constant 0 : index
      %19 = vector.load %arg8[%c0_16, %c0_17] : memref<16x32xf32, #tpu.memory_space<vmem>>, vector<16x32xf32>
      %c0_18 = arith.constant 0 : index
      %c0_19 = arith.constant 0 : index
      %20 = vector.load %arg6[%c0_18, %c0_19] : memref<1x32xf32, #tpu.memory_space<vmem>>, vector<1x32xf32>
      %21 = vector.broadcast %20 : vector<1x32xf32> to vector<16x32xf32>
      %22 = arith.addf %19, %21 : vector<16x32xf32>
      %c0_20 = arith.constant 0 : index
      %c0_21 = arith.constant 0 : index
      %23 = vector.load %arg7[%c0_20, %c0_21] : memref<16x32xf32, #tpu.memory_space<vmem>>, vector<16x32xf32>
      tpu.vector_store %arg7[%c0_20, %c0_21], %22 {strides = array<i32>} : memref<16x32xf32, #tpu.memory_space<vmem>>, vector<16x32xf32>,
    } else {
    }
    return
  }
  func.func @transform_0(%arg0: i32, %arg1: i32) -> (i32, i32) {
    %c0_i32 = arith.constant 0 : i32
    %c0_i32_0 = arith.constant 0 : i32
    return %arg0, %c0_i32 : i32, i32
  }
  func.func @transform_1(%arg0: i32, %arg1: i32) -> (i32, i32) {
    %c0_i32 = arith.constant 0 : i32
    %c0_i32_0 = arith.constant 0 : i32
    return %c0_i32, %arg1 : i32, i32
  }
  func.func @transform_2(%arg0: i32, %arg1: i32) -> (i32, i32) {
    %c0_i32 = arith.constant 0 : i32
    %c0_i32_0 = arith.constant 0 : i32
    return %c0_i32, %arg1 : i32, i32
  }
  func.func @transform_3(%arg0: i32, %arg1: i32) -> (i32, i32) {
    %c0_i32 = arith.constant 0 : i32
    %c0_i32_0 = arith.constant 0 : i32
    return %arg1, %c0_i32 : i32, i32
  }
  func.func @transform_4(%arg0: i32, %arg1: i32) -> (i32, i32) {
    %c0_i32 = arith.constant 0 : i32
    %c0_i32_0 = arith.constant 0 : i32
    %c0_i32_1 = arith.constant 0 : i32
    return %c0_i32, %c0_i32_0 : i32, i32
  }
  func.func @transform_5(%arg0: i32, %arg1: i32) -> (i32, i32) {
    %c0_i32 = arith.constant 0 : i32
    %c0_i32_0 = arith.constant 0 : i32
    return %arg0, %c0_i32 : i32, i32
  }
}

</mosaic_0001>

<llo_original>
// kernel: tpu_custom_call.1
$region0: #{tpu_custom_call.1}
  #allocation0 [shape = 'u32[]', space=smem, size = 0x4, offset = 0x4, fixed_abs, tag = 'smem constant byte address 0x4 - core index']
  #allocation1 [shape = 'u32[144,128]{1,0:T(1,128)}', space=vmem, size = 0x12000, scoped, tag = 'internal scratch']
  #allocation2 [shape = 'f32[16,32]{1,0:T(8,128)}', space=vmem, size = 0x2000, scoped, tag = 'scratch operand']
  %s0 = inlined_call_operand.vmem [shape: f32[16,32], index: 0, kind: input, shape index: {}]
  %s1 = inlined_call_operand.vmem [shape: f32[32,128], index: 1, kind: input, shape index: {}]
  %s2 = inlined_call_operand.vmem [shape: f32[1,128], index: 2, kind: input, shape index: {}]
  %s3 = inlined_call_operand.vmem [shape: f32[128,32], index: 3, kind: input, shape index: {}]
  %s4 = inlined_call_operand.vmem [shape: f32[1,32], index: 4, kind: input, shape index: {}]
  %s5 = inlined_call_operand.hbm [shape: f32[16,32], index: 5, kind: output, shape index: {}]
  %s6 = sld [smem:[#allocation0]]
  $region38: #{tpu_custom_call.1} parent=0
    _
  %s8 = ssub.s32 1, %s6
  %s9 = scalar_select 0, %s8, %s6
  $region1: #{tpu_custom_call.1} parent=0
    #allocation3 [shape = 'u8[8192]{0}', space=vmem, size = 0x2000, scoped, tag = 'output window, operand 0, single buffered']
    #allocation4 [shape = 's32[1]{0}', space=sflag, size = 0x4, scoped, tag = 'scoped memory for tpu_custom_call.1']
    %10 = vsyncpa [#allocation4], 0
    // Predicated region
    $region2: #{tpu_custom_call.1} parent=1 // pred_check
      _
    $region3: #{tpu_custom_call.1} parent=1 // pred_check_branch
      %12 = sbr.rel (0) target = $region5
    $region4: #{tpu_custom_call.1} parent=1 // pred_region
      _
    $region5: #{tpu_custom_call.1} parent=1 // pred_fallthru
      _
    // Predicated region
    $region6: #{tpu_custom_call.1} parent=1 // pred_check
      _
    $region7: #{tpu_custom_call.1} parent=1 // pred_check_branch
      %14 = sbr.rel (0) target = $region9
    $region8: #{tpu_custom_call.1} parent=1 // pred_region
      _
    $region9: #{tpu_custom_call.1} parent=1 // pred_fallthru
      _
    // Predicated region
    $region10: #{tpu_custom_call.1} parent=1 // pred_check
      _
    $region11: #{tpu_custom_call.1} parent=1 // pred_check_branch
      %16 = sbr.rel (0) target = $region13
    $region12: #{tpu_custom_call.1} parent=1 // pred_region
      _
    $region13: #{tpu_custom_call.1} parent=1 // pred_fallthru
      _
    // Predicated region
    $region14: #{tpu_custom_call.1} parent=1 // pred_check
      _
    $region15: #{tpu_custom_call.1} parent=1 // pred_check_branch
      %18 = sbr.rel (0) target = $region17
    $region16: #{tpu_custom_call.1} parent=1 // pred_region
      _
    $region17: #{tpu_custom_call.1} parent=1 // pred_fallthru
      _
    // Predicated region
    $region18: #{tpu_custom_call.1} parent=1 // pred_check
      _
    $region19: #{tpu_custom_call.1} parent=1 // pred_check_branch
      %20 = sbr.rel (0) target = $region21
    $region20: #{tpu_custom_call.1} parent=1 // pred_region
      _
    $region21: #{tpu_custom_call.1} parent=1 // pred_fallthru
      _
    %p21 = scmp.eq.s32.totalorder 0, 0
    // Predicated region
    $region22: #{tpu_custom_call.1} parent=1 // pred_check
      %p22 = pneg %p21
    $region23: #{tpu_custom_call.1} parent=1 // pred_check_branch
      %24 = sbr.rel (%p22) target = $region25
    $region24: #{tpu_custom_call.1} parent=1 // pred_region
      %vm25 = vcmask 261120
      %26 = vst.msk [vmem:[#allocation2] sm:$0xff] %vm25, 0.0
      %27 = vst.msk [vmem:[#allocation2 + $0x8] sm:$0xff] %vm25, 0.0
    $region25: #{tpu_custom_call.1} parent=1 // pred_fallthru
      _
    %v28 = vld [vmem:[%s0] sm:$0xff]
    %v29 = vld [vmem:[%s0 + $0x8] sm:$0xff]
    %v30 = vld [vmem:[%s1] sm:$0xff]
    %v31 = vld [vmem:[%s1 + $0x8] sm:$0xff]
    %v32 = vld [vmem:[%s1 + $0x10] sm:$0xff]
    %v33 = vld [vmem:[%s1 + $0x18] sm:$0xff]
    %v34 = vld [vmem:[%s2] sm:$0x1]
    %v36 = vlaneseq
    %v37 = vshrl.u32 %v36, 7
    %v38 = vsub.s32 0, %v37
    %v39 = vrot.slane %v34, %v38
    %vm41 = vcmask 261120
    %v43 = vsel %vm41, %v28, 0
    %v46 = vsel %vm41, %v29, 0
    %48 = vmatprep.subr.mxu0 0.0
    %49 = vmatpush1.msra.mxu0 0.0
    %50 = vmatprep.subr.mxu0 0.0
    %51 = vmatpush1.msra.mxu0 0.0
    %52 = vmatprep.subr.mxu0 0.0
    %53 = vmatpush1.msra.mxu0 0.0
    %54 = vmatprep.subr.mxu0 0.0
    %55 = vmatpush1.msra.mxu0 0.0
    %56 = vmatprep.subr.mxu0 0.0
    %57 = vmatpush1.msra.mxu0 0.0
    %58 = vmatprep.subr.mxu0 0.0
    %59 = vmatpush1.msra.mxu0 0.0
    %60 = vmatprep.subr.mxu0 0.0
    %61 = vmatpush1.msra.mxu0 0.0
    %62 = vmatprep.subr.mxu0 0.0
    %63 = vmatpush1.msra.mxu0 0.0
    %64 = vmatprep.subr.mxu0 0.0
    %65 = vmatpush1.msra.mxu0 0.0
    %66 = vmatprep.subr.mxu0 0.0
    %67 = vmatpush1.msra.mxu0 0.0
    %68 = vmatprep.subr.mxu0 0.0
    %69 = vmatpush1.msra.mxu0 0.0
    %70 = vmatprep.subr.mxu0 0.0
    %71 = vmatpush1.msra.mxu0 0.0
    %72 = vmatprep.subr.mxu0 0.0
    %73 = vmatpush1.msra.mxu0 %v33
    %74 = vmatprep.subr.mxu0 0.0
    %75 = vmatpush1.msra.mxu0 %v32
    %76 = vmatprep.subr.mxu0 0.0
    %77 = vmatpush1.msra.mxu0 %v31
    %78 = vmatprep.subr.mxu0 0.0
    %79 = vmatpush1.msra.mxu0 %v30
    %80 = vmatprep.subr.mxu0 0.0
    %81 = vmatpush2.msra.mxu0 0.0
    %82 = vmatprep.subr.mxu0 0.0
    %83 = vmatpush2.msra.mxu0 0.0
    %84 = vmatprep.subr.mxu0 0.0
    %85 = vmatpush2.msra.mxu0 0.0
    %86 = vmatprep.subr.mxu0 0.0
    %87 = vmatpush2.msra.mxu0 0.0
    %88 = vmatprep.subr.mxu0 0.0
    %89 = vmatpush2.msra.mxu0 0.0
    %90 = vmatprep.subr.mxu0 0.0
    %91 = vmatpush2.msra.mxu0 0.0
    %92 = vmatprep.subr.mxu0 0.0
    %93 = vmatpush2.msra.mxu0 0.0
    %94 = vmatprep.subr.mxu0 0.0
    %95 = vmatpush2.msra.mxu0 0.0
    %96 = vmatprep.subr.mxu0 0.0
    %97 = vmatpush2.msra.mxu0 0.0
    %98 = vmatprep.subr.mxu0 0.0
    %99 = vmatpush2.msra.mxu0 0.0
    %100 = vmatprep.subr.mxu0 0.0
    %101 = vmatpush2.msra.mxu0 0.0
    %102 = vmatprep.subr.mxu0 0.0
    %103 = vmatpush2.msra.mxu0 0.0
    %104 = vmatprep.subr.mxu0 0.0
    %105 = vmatpush2.msra.mxu0 0.0
    %106 = vmatprep.subr.mxu0 0.0
    %107 = vmatpush2.msra.mxu0 0.0
    %108 = vmatprep.subr.mxu0 0.0
    %109 = vmatpush2.msra.mxu0 0.0
    %110 = vmatprep.subr.mxu0 0.0
    %111 = vmatpush2.msra.mxu0 0.0
    %112 = vmatprep.mubr.f32.mxu0 0.0
    %113 = vmatmul.mubr.f32.gmra.mxu0 %v43
    %v114 = vpop.f32.mrf.mxu0
    %v115 = vadd.f32 %v39, %v114
    %v116 = vpop.f32.mrf.mxu0
    %117 = vmatprep.mubr.f32.mxu0 0.0
    %118 = vmatmul.mubr.f32.gmra.mxu0 %v46
    %v119 = vpop.f32.mrf.mxu0
    %v120 = vadd.f32 %v39, %v119
    %v121 = vpop.f32.mrf.mxu0
    %122 = vdwg.mxu0
    %v123 = vmax.f32 %v115, 0.0
    %v124 = vmax.f32 %v120, 0.0
    %v125 = vld [vmem:[#allocation2] sm:$0xff]
    %v126 = vld [vmem:[#allocation2 + $0x8] sm:$0xff]
    %v127 = vld [vmem:[%s3] sm:$0xff]
    %v128 = vld [vmem:[%s3 + $0x8] sm:$0xff]
    %v129 = vld [vmem:[%s3 + $0x10] sm:$0xff]
    %v130 = vld [vmem:[%s3 + $0x18] sm:$0xff]
    %v131 = vld [vmem:[%s3 + $0x20] sm:$0xff]
    %v132 = vld [vmem:[%s3 + $0x28] sm:$0xff]
    %v133 = vld [vmem:[%s3 + $0x30] sm:$0xff]
    %v134 = vld [vmem:[%s3 + $0x38] sm:$0xff]
    %v135 = vld [vmem:[%s3 + $0x40] sm:$0xff]
    %v136 = vld [vmem:[%s3 + $0x48] sm:$0xff]
    %v137 = vld [vmem:[%s3 + $0x50] sm:$0xff]
    %v138 = vld [vmem:[%s3 + $0x58] sm:$0xff]
    %v139 = vld [vmem:[%s3 + $0x60] sm:$0xff]
    %v140 = vld [vmem:[%s3 + $0x68] sm:$0xff]
    %v141 = vld [vmem:[%s3 + $0x70] sm:$0xff]
    %v142 = vld [vmem:[%s3 + $0x78] sm:$0xff]
    %143 = vmatprep.subr.mxu0 0.0
    %144 = vmatpush1.msra.mxu0 %v142
    %145 = vmatprep.subr.mxu0 0.0
    %146 = vmatpush1.msra.mxu0 %v141
    %147 = vmatprep.subr.mxu0 0.0
    %148 = vmatpush1.msra.mxu0 %v140
    %149 = vmatprep.subr.mxu0 0.0
    %150 = vmatpush1.msra.mxu0 %v139
    %151 = vmatprep.subr.mxu0 0.0
    %152 = vmatpush1.msra.mxu0 %v138
    %153 = vmatprep.subr.mxu0 0.0
    %154 = vmatpush1.msra.mxu0 %v137
    %155 = vmatprep.subr.mxu0 0.0
    %156 = vmatpush1.msra.mxu0 %v136
    %157 = vmatprep.subr.mxu0 0.0
    %158 = vmatpush1.msra.mxu0 %v135
    %159 = vmatprep.subr.mxu0 0.0
    %160 = vmatpush1.msra.mxu0 %v134
    %161 = vmatprep.subr.mxu0 0.0
    %162 = vmatpush1.msra.mxu0 %v133
    %163 = vmatprep.subr.mxu0 0.0
    %164 = vmatpush1.msra.mxu0 %v132
    %165 = vmatprep.subr.mxu0 0.0
    %166 = vmatpush1.msra.mxu0 %v131
    %167 = vmatprep.subr.mxu0 0.0
    %168 = vmatpush1.msra.mxu0 %v130
    %169 = vmatprep.subr.mxu0 0.0
    %170 = vmatpush1.msra.mxu0 %v129
    %171 = vmatprep.subr.mxu0 0.0
    %172 = vmatpush1.msra.mxu0 %v128
    %173 = vmatprep.subr.mxu0 0.0
    %174 = vmatpush1.msra.mxu0 %v127
    %175 = vmatprep.subr.mxu0 0.0
    %176 = vmatpush2.msra.mxu0 0.0
    %177 = vmatprep.subr.mxu0 0.0
    %178 = vmatpush2.msra.mxu0 0.0
    %179 = vmatprep.subr.mxu0 0.0
    %180 = vmatpush2.msra.mxu0 0.0
    %181 = vmatprep.subr.mxu0 0.0
    %182 = vmatpush2.msra.mxu0 0.0
    %183 = vmatprep.subr.mxu0 0.0
    %184 = vmatpush2.msra.mxu0 0.0
    %185 = vmatprep.subr.mxu0 0.0
    %186 = vmatpush2.msra.mxu0 0.0
    %187 = vmatprep.subr.mxu0 0.0
    %188 = vmatpush2.msra.mxu0 0.0
    %189 = vmatprep.subr.mxu0 0.0
    %190 = vmatpush2.msra.mxu0 0.0
    %191 = vmatprep.subr.mxu0 0.0
    %192 = vmatpush2.msra.mxu0 0.0
    %193 = vmatprep.subr.mxu0 0.0
    %194 = vmatpush2.msra.mxu0 0.0
    %195 = vmatprep.subr.mxu0 0.0
    %196 = vmatpush2.msra.mxu0 0.0
    %197 = vmatprep.subr.mxu0 0.0
    %198 = vmatpush2.msra.mxu0 0.0
    %199 = vmatprep.subr.mxu0 0.0
    %200 = vmatpush2.msra.mxu0 0.0
    %201 = vmatprep.subr.mxu0 0.0
    %202 = vmatpush2.msra.mxu0 0.0
    %203 = vmatprep.subr.mxu0 0.0
    %204 = vmatpush2.msra.mxu0 0.0
    %205 = vmatprep.subr.mxu0 0.0
    %206 = vmatpush2.msra.mxu0 0.0
    %207 = vmatprep.mubr.f32.mxu0 0.0
    %208 = vmatmul.mubr.f32.gmra.mxu0 %v123
    %v209 = vpop.f32.mrf.mxu0
    %v210 = vadd.f32 0.0, %v209
    %v211 = vpop.f32.mrf.mxu0
    %212 = vmatprep.mubr.f32.mxu0 0.0
    %213 = vmatmul.mubr.f32.gmra.mxu0 %v124
    %v214 = vpop.f32.mrf.mxu0
    %v215 = vadd.f32 0.0, %v214
    %v216 = vpop.f32.mrf.mxu0
    %217 = vdwg.mxu0
    %v218 = vadd.f32 %v125, %v210
    %v219 = vadd.f32 %v126, %v215
    %220 = vst.msk [vmem:[#allocation2] sm:$0xff] %vm41, %v218
    %221 = vst.msk [vmem:[#allocation2 + $0x8] sm:$0xff] %vm41, %v219
    // Predicated region
    $region26: #{tpu_custom_call.1} parent=1 // pred_check
      %p222 = pneg %p21
    $region27: #{tpu_custom_call.1} parent=1 // pred_check_branch
      %224 = sbr.rel (%p222) target = $region29
    $region28: #{tpu_custom_call.1} parent=1 // pred_region
      %v225 = vld [vmem:[#allocation2] sm:$0xff]
      %v226 = vld [vmem:[#allocation2 + $0x8] sm:$0xff]
      %v227 = vld [vmem:[%s4] sm:$0x1]
      %v229 = vlaneseq
      %v230 = vshrl.u32 %v229, 7
      %v231 = vsub.s32 0, %v230
      %v232 = vrot.slane %v227, %v231
      %v234 = vadd.f32 %v225, %v232
      %v235 = vadd.f32 %v226, %v232
      %236 = vst.msk [vmem:[#allocation3] sm:$0xff] %vm41, %v234
      %237 = vst.msk [vmem:[#allocation3 + $0x8] sm:$0xff] %vm41, %v235
    $region29: #{tpu_custom_call.1} parent=1 // pred_fallthru
      _
    // Predicated region
    $region30: #{tpu_custom_call.1} parent=1 // pred_check
      _
    $region31: #{tpu_custom_call.1} parent=1 // pred_check_branch
      %239 = sbr.rel (0) target = $region33
    $region32: #{tpu_custom_call.1} parent=1 // pred_region
      %s241 = ssub.s32 256, 256
      %242 = vsyncadd [#allocation4], %s241
      %s243 = sshll.u32 [#allocation3], 4
      %s244 = int_to_ptr.vmem [resolvable:$true] %s243
      %249 = dma.vmem_to_hbm [thread:$0]  %s244, 256, %s5, [#allocation4], 128, 128, 8
    $region33: #{tpu_custom_call.1} parent=1 // pred_fallthru
      _
    // Predicated region
    $region34: #{tpu_custom_call.1} parent=1 // pred_check
      _
    $region35: #{tpu_custom_call.1} parent=1 // pred_check_branch
      %251 = sbr.rel (0) target = $region37
    $region36: #{tpu_custom_call.1} parent=1 // pred_region
      %252 = dma.done [#allocation4], 256
    $region37: #{tpu_custom_call.1} parent=1 // pred_fallthru
      _
    %253 = vsyncpa [#allocation4], 1

</llo_original>
